<compile_context>
chip_gen: v7x
topology: tpu7x:2x2x1
jax: 0.10.0
libtpu: 0.0.40
codegen_flags: <defaults>
</compile_context>

<pallas_src>
import jax
import jax.numpy as jnp
from jax.experimental import pallas as pl
from jax.experimental.pallas import tpu as pltpu

# Problem sizes (consistent with Apc: Conv2d(3, 6, 2, 1, padding=0))
N, C_IN, H, W = 2, 3, 16, 16
C_OUT, KH, KW = 6, 2, 2
H_OUT, W_OUT = H - KH + 1, W - KW + 1   # stride=1, no padding -> 15, 15


def conv2d_kernel(x_ref, w_ref, b_ref, o_ref):
    """Single invocation (no grid); whole problem resident in VMEM.

    x_ref: (N, K, S)      im2col patches, K = C_IN*KH*KW, S = H_OUT*W_OUT (lanes)
    w_ref: (C_OUT, K)     flattened conv weights
    b_ref: (C_OUT, 1)     bias (broadcast over lanes)
    o_ref: (N, C_OUT, S)  output, spatial on lanes (lane-dense stores)
    """
    w = w_ref[...]
    b = b_ref[...]
    # Static unroll over the (small) batch: each step is one MXU matmul with
    # spatial on the lane axis; bias is fused into the same pass.
    for n in range(x_ref.shape[0]):
        acc = jnp.dot(w, x_ref[n], preferred_element_type=jnp.float32) + b
        o_ref[n] = acc.astype(o_ref.dtype)


@jax.jit
def apc_forward(x_nchw, w_oihw, bias):
    """Forward of Apc: conv1(x). x_nchw: (N, 3, H, W) -> (N, 6, H-1, W-1)."""
    n, c_in, h, w = x_nchw.shape
    c_out, _, kh_, kw_ = w_oihw.shape
    h_out, w_out = h - kh_ + 1, w - kw_ + 1
    s = h_out * w_out
    k = c_in * kh_ * kw_

    # im2col in the wrapper (XLA): NCHW already has spatial last, so no transposes.
    # Contraction-dim ordering is (C_IN, KH, KW) to match w_oihw.reshape(C_OUT, -1).
    taps = [
        x_nchw[:, :, i:i + h_out, j:j + w_out]
        for i in range(kh_) for j in range(kw_)
    ]
    patches = jnp.stack(taps, axis=2)            # (N, C_IN, KH*KW, H_OUT, W_OUT)
    patches = patches.reshape(n, k, s)           # (N, K, S), spatial on lanes

    w2d = w_oihw.reshape(c_out, k)               # (C_OUT, K)
    b2d = bias.reshape(c_out, 1)                 # (C_OUT, 1)

    out = pl.pallas_call(
        conv2d_kernel,
        out_shape=jax.ShapeDtypeStruct((n, c_out, s), x_nchw.dtype),
        in_specs=[
            pl.BlockSpec(memory_space=pltpu.MemorySpace.VMEM),
            pl.BlockSpec(memory_space=pltpu.MemorySpace.VMEM),
            pl.BlockSpec(memory_space=pltpu.MemorySpace.VMEM),
        ],
        out_specs=pl.BlockSpec(memory_space=pltpu.MemorySpace.VMEM),
    )(patches, w2d, b2d)

    # (N, C_OUT, S) -> (N, C_OUT, H_OUT, W_OUT): pure reshape, no transpose.
    return out.reshape(n, c_out, h_out, w_out)


def _init_params(key):
    """Deterministic init mirroring nn.Conv2d default (uniform +/- 1/sqrt(fan_in))."""
    k_w, k_b = jax.random.split(key)
    fan_in = C_IN * KH * KW
    bound = 1.0 / jnp.sqrt(float(fan_in))
    w = jax.random.uniform(k_w, (C_OUT, C_IN, KH, KW), jnp.float32, -bound, bound)
    b = jax.random.uniform(k_b, (C_OUT,), jnp.float32, -bound, bound)
    return w, b


if __name__ == "__main__":
    key = jax.random.PRNGKey(0)
    k_x, k_p = jax.random.split(key)
    x = jax.random.normal(k_x, (N, C_IN, H, W), jnp.float32)
    w, b = _init_params(k_p)

    out = apc_forward(x, w, b)
    out = jax.block_until_ready(out)

    # Reference check against XLA's conv.
    ref = jax.lax.conv_general_dilated(
        x, w, window_strides=(1, 1), padding="VALID",
        dimension_numbers=("NCHW", "OIHW", "NCHW"),
    ) + b.reshape(1, C_OUT, 1, 1)
    assert out.shape == (N, C_OUT, H_OUT, W_OUT), out.shape
    assert jnp.allclose(out, ref, atol=1e-5, rtol=1e-5), "mismatch vs reference conv"

    print("KERNEL_OK")
</pallas_src>

<mosaic_0001>
module attributes {stable_mosaic.version = 11 : i64} {
  func.func @conv2d_kernel(%arg0: memref<2x12x225xf32, #tpu.memory_space<vmem>>, %arg1: memref<6x12xf32, #tpu.memory_space<vmem>>, %arg2: memref<6x1xf32, #tpu.memory_space<vmem>>, %arg3: memref<2x6x225xf32, #tpu.memory_space<vmem>>) attributes {dimension_semantics = [], scalar_prefetch = 0 : i64, scratch_operands = 0 : i64, tpu.core_type = #tpu.core_type<tc>} {
    %c0 = arith.constant 0 : index
    %c0_0 = arith.constant 0 : index
    %0 = vector.load %arg1[%c0, %c0_0] : memref<6x12xf32, #tpu.memory_space<vmem>>, vector<6x12xf32>
    %c0_1 = arith.constant 0 : index
    %c0_2 = arith.constant 0 : index
    %1 = vector.load %arg2[%c0_1, %c0_2] : memref<6x1xf32, #tpu.memory_space<vmem>>, vector<6x1xf32>
    %c0_3 = arith.constant 0 : index
    %c0_4 = arith.constant 0 : index
    %c0_5 = arith.constant 0 : index
    %2 = vector.load %arg0[%c0_3, %c0_4, %c0_5] : memref<2x12x225xf32, #tpu.memory_space<vmem>>, vector<1x12x225xf32>
    %3 = vector.shape_cast %2 : vector<1x12x225xf32> to vector<12x225xf32>
    %cst = arith.constant dense<0.000000e+00> : vector<6x225xf32>
    %4 = tpu.matmul %0, %3, %cst {dimension_numbers = #tpu.dot_dimension_numbers<[1], [0], [0], [1], [0, 0, 1, 1], [], []>} : vector<6x12xf32>, vector<12x225xf32>, vector<6x225xf32> -> vector<6x225xf32>
    %5 = vector.broadcast %1 : vector<6x1xf32> to vector<6x225xf32>
    %6 = arith.addf %4, %5 : vector<6x225xf32>
    %c0_6 = arith.constant 0 : index
    %c0_7 = arith.constant 0 : index
    %c0_8 = arith.constant 0 : index
    %7 = vector.load %arg3[%c0_6, %c0_7, %c0_8] : memref<2x6x225xf32, #tpu.memory_space<vmem>>, vector<1x6x225xf32>
    %8 = vector.shape_cast %7 : vector<1x6x225xf32> to vector<6x225xf32>
    %9 = vector.shape_cast %6 : vector<6x225xf32> to vector<1x6x225xf32>
    tpu.vector_store %arg3[%c0_6, %c0_7, %c0_8], %9 {strides = array<i32>} : memref<2x6x225xf32, #tpu.memory_space<vmem>>, vector<1x6x225xf32>,
    %c1 = arith.constant 1 : index
    %c0_9 = arith.constant 0 : index
    %c0_10 = arith.constant 0 : index
    %10 = vector.load %arg0[%c1, %c0_9, %c0_10] : memref<2x12x225xf32, #tpu.memory_space<vmem>>, vector<1x12x225xf32>
    %11 = vector.shape_cast %10 : vector<1x12x225xf32> to vector<12x225xf32>
    %cst_11 = arith.constant dense<0.000000e+00> : vector<6x225xf32>
    %12 = tpu.matmul %0, %11, %cst_11 {dimension_numbers = #tpu.dot_dimension_numbers<[1], [0], [0], [1], [0, 0, 1, 1], [], []>} : vector<6x12xf32>, vector<12x225xf32>, vector<6x225xf32> -> vector<6x225xf32>
    %13 = vector.broadcast %1 : vector<6x1xf32> to vector<6x225xf32>
    %14 = arith.addf %12, %13 : vector<6x225xf32>
    %c1_12 = arith.constant 1 : index
    %c0_13 = arith.constant 0 : index
    %c0_14 = arith.constant 0 : index
    %15 = vector.load %arg3[%c1_12, %c0_13, %c0_14] : memref<2x6x225xf32, #tpu.memory_space<vmem>>, vector<1x6x225xf32>
    %16 = vector.shape_cast %15 : vector<1x6x225xf32> to vector<6x225xf32>
    %17 = vector.shape_cast %14 : vector<6x225xf32> to vector<1x6x225xf32>
    tpu.vector_store %arg3[%c1_12, %c0_13, %c0_14], %17 {strides = array<i32>} : memref<2x6x225xf32, #tpu.memory_space<vmem>>, vector<1x6x225xf32>,
    return
  }
}

</mosaic_0001>

<llo_original>
// kernel: apc_forward.1
$region0: #{apc_forward.1}
  #allocation0 [shape = 'u32[]', space=smem, size = 0x4, offset = 0x4, fixed_abs, tag = 'smem constant byte address 0x4 - core index']
  #allocation1 [shape = 'u32[144,128]{1,0:T(1,128)}', space=vmem, size = 0x12000, scoped, tag = 'internal scratch']
  %s0 = inlined_call_operand.vmem [shape: f32[2,12,225], index: 0, kind: input, shape index: {}]
  %s1 = inlined_call_operand.vmem [shape: f32[6,12], index: 1, kind: input, shape index: {}]
  %s2 = inlined_call_operand.vmem [shape: f32[6,1], index: 2, kind: input, shape index: {}]
  %s3 = inlined_call_operand.vmem [shape: f32[2,6,225], index: 3, kind: output, shape index: {}]
  %s4 = sld [smem:[#allocation0]]
  $region22: #{apc_forward.1} parent=0
    _
  %s6 = ssub.s32 1, %s4
  %s7 = scalar_select 0, %s6, %s4
  // Predicated region
  $region2: #{apc_forward.1} parent=0 // pred_check
    _
  $region3: #{apc_forward.1} parent=0 // pred_check_branch
    %9 = sbr.rel (0) target = $region5
  $region4: #{apc_forward.1} parent=0 // pred_region
    _
  $region5: #{apc_forward.1} parent=0 // pred_fallthru
    _
  // Predicated region
  $region6: #{apc_forward.1} parent=0 // pred_check
    _
  $region7: #{apc_forward.1} parent=0 // pred_check_branch
    %11 = sbr.rel (0) target = $region9
  $region8: #{apc_forward.1} parent=0 // pred_region
    _
  $region9: #{apc_forward.1} parent=0 // pred_fallthru
    _
  // Predicated region
  $region10: #{apc_forward.1} parent=0 // pred_check
    _
  $region11: #{apc_forward.1} parent=0 // pred_check_branch
    %13 = sbr.rel (0) target = $region13
  $region12: #{apc_forward.1} parent=0 // pred_region
    _
  $region13: #{apc_forward.1} parent=0 // pred_fallthru
    _
  %v14 = vld [vmem:[%s1] sm:$0x3f]
  %v15 = vld [vmem:[%s2] sm:$0x3f]
  %v16 = vld [vmem:[%s0] sm:$0xff]
  %v17 = vld [vmem:[%s0 + $0x8] sm:$0xff]
  %v18 = vld [vmem:[%s0 + $0x10] sm:$0xf]
  %v19 = vld [vmem:[%s0 + $0x18] sm:$0xf]
  %21 = vset.pattern.permute.xlu0 0
  %22 = vperm.xlu0 %21, %v15
  %v23 = vpop.permute.xlu0 %22
  %vm25 = vcmask 97280
  %v27 = vsel %vm25, %v14, 0
  %vm29 = vcmask 1043456
  %v31 = vsel %vm29, %v18, 0
  %v34 = vsel %vm29, %v19, 0
  %36 = vmatprep.subr.mxu0 %v17
  %37 = vmatpush1.msra.mxu0 %v16
  %38 = vmatprep.subr.mxu0 %v34
  %39 = vmatpush1.msra.mxu0 %v31
  %40 = vmatprep.subr.mxu0 0.0
  %41 = vmatpush1.msra.mxu0 0.0
  %42 = vmatprep.subr.mxu0 0.0
  %43 = vmatpush1.msra.mxu0 0.0
  %44 = vmatprep.subr.mxu0 0.0
  %45 = vmatpush1.msra.mxu0 0.0
  %46 = vmatprep.subr.mxu0 0.0
  %47 = vmatpush1.msra.mxu0 0.0
  %48 = vmatprep.subr.mxu0 0.0
  %49 = vmatpush1.msra.mxu0 0.0
  %50 = vmatprep.subr.mxu0 0.0
  %51 = vmatpush1.msra.mxu0 0.0
  %52 = vmatprep.subr.mxu0 0.0
  %53 = vmatpush1.msra.mxu0 0.0
  %54 = vmatprep.subr.mxu0 0.0
  %55 = vmatpush1.msra.mxu0 0.0
  %56 = vmatprep.subr.mxu0 0.0
  %57 = vmatpush1.msra.mxu0 0.0
  %58 = vmatprep.subr.mxu0 0.0
  %59 = vmatpush1.msra.mxu0 0.0
  %60 = vmatprep.subr.mxu0 0.0
  %61 = vmatpush1.msra.mxu0 0.0
  %62 = vmatprep.subr.mxu0 0.0
  %63 = vmatpush1.msra.mxu0 0.0
  %64 = vmatprep.subr.mxu0 0.0
  %65 = vmatpush1.msra.mxu0 0.0
  %66 = vmatprep.subr.mxu0 0.0
  %67 = vmatpush1.msra.mxu0 0.0
  %68 = vmatprep.subr.mxu0 0.0
  %69 = vmatpush1.msra.mxu0 0.0
  %70 = vmatprep.subr.mxu0 0.0
  %71 = vmatpush1.msra.mxu0 0.0
  %72 = vmatprep.subr.mxu0 0.0
  %73 = vmatpush1.msra.mxu0 0.0
  %74 = vmatprep.subr.mxu0 0.0
  %75 = vmatpush1.msra.mxu0 0.0
  %76 = vmatprep.subr.mxu0 0.0
  %77 = vmatpush1.msra.mxu0 0.0
  %78 = vmatprep.subr.mxu0 0.0
  %79 = vmatpush1.msra.mxu0 0.0
  %80 = vmatprep.subr.mxu0 0.0
  %81 = vmatpush1.msra.mxu0 0.0
  %82 = vmatprep.subr.mxu0 0.0
  %83 = vmatpush1.msra.mxu0 0.0
  %84 = vmatprep.subr.mxu0 0.0
  %85 = vmatpush1.msra.mxu0 0.0
  %86 = vmatprep.subr.mxu0 0.0
  %87 = vmatpush1.msra.mxu0 0.0
  %88 = vmatprep.subr.mxu0 0.0
  %89 = vmatpush1.msra.mxu0 0.0
  %90 = vmatprep.subr.mxu0 0.0
  %91 = vmatpush1.msra.mxu0 0.0
  %92 = vmatprep.subr.mxu0 0.0
  %93 = vmatpush1.msra.mxu0 0.0
  %94 = vmatprep.subr.mxu0 0.0
  %95 = vmatpush1.msra.mxu0 0.0
  %96 = vmatprep.subr.mxu0 0.0
  %97 = vmatpush1.msra.mxu0 0.0
  %98 = vmatprep.subr.mxu0 0.0
  %99 = vmatpush1.msra.mxu0 0.0
  %100 = vmatprep.mubr.f32.mxu0 0.0
  %101 = vmatmul.mubr.f32.gmra.mrb[0].mxu0 %v27
  %v102 = vpop.f32.mrb[0].mxu0
  %v103 = vadd.f32 %v23, %v102
  %v104 = vpop.f32.mrb[0].mxu0
  %v105 = vadd.f32 %v23, %v104
  %106 = vdwg.mxu0
  %107 = vst [vmem:[%s3] sm:$0x3f] %v103
  %vm108 = vcmask 791552
  %109 = vst.msk [vmem:[%s3 + $0x8] sm:$0x3f] %vm108, %v105
  %s110 = scalar_lea.vmem %s0, 32
  %v111 = vld [vmem:[%s110] sm:$0xff]
  %v112 = vld [vmem:[%s110 + $0x8] sm:$0xff]
  %v113 = vld [vmem:[%s110 + $0x10] sm:$0xf]
  %v114 = vld [vmem:[%s110 + $0x18] sm:$0xf]
  %v116 = vsel %vm29, %v113, 0
  %v119 = vsel %vm29, %v114, 0
  %121 = vmatprep.subr.mxu0 %v112
  %122 = vmatpush1.msra.mxu0 %v111
  %123 = vmatprep.subr.mxu0 %v119
  %124 = vmatpush1.msra.mxu0 %v116
  %125 = vmatprep.subr.mxu0 0.0
  %126 = vmatpush1.msra.mxu0 0.0
  %127 = vmatprep.subr.mxu0 0.0
  %128 = vmatpush1.msra.mxu0 0.0
  %129 = vmatprep.subr.mxu0 0.0
  %130 = vmatpush1.msra.mxu0 0.0
  %131 = vmatprep.subr.mxu0 0.0
  %132 = vmatpush1.msra.mxu0 0.0
  %133 = vmatprep.subr.mxu0 0.0
  %134 = vmatpush1.msra.mxu0 0.0
  %135 = vmatprep.subr.mxu0 0.0
  %136 = vmatpush1.msra.mxu0 0.0
  %137 = vmatprep.subr.mxu0 0.0
  %138 = vmatpush1.msra.mxu0 0.0
  %139 = vmatprep.subr.mxu0 0.0
  %140 = vmatpush1.msra.mxu0 0.0
  %141 = vmatprep.subr.mxu0 0.0
  %142 = vmatpush1.msra.mxu0 0.0
  %143 = vmatprep.subr.mxu0 0.0
  %144 = vmatpush1.msra.mxu0 0.0
  %145 = vmatprep.subr.mxu0 0.0
  %146 = vmatpush1.msra.mxu0 0.0
  %147 = vmatprep.subr.mxu0 0.0
  %148 = vmatpush1.msra.mxu0 0.0
  %149 = vmatprep.subr.mxu0 0.0
  %150 = vmatpush1.msra.mxu0 0.0
  %151 = vmatprep.subr.mxu0 0.0
  %152 = vmatpush1.msra.mxu0 0.0
  %153 = vmatprep.subr.mxu0 0.0
  %154 = vmatpush1.msra.mxu0 0.0
  %155 = vmatprep.subr.mxu0 0.0
  %156 = vmatpush1.msra.mxu0 0.0
  %157 = vmatprep.subr.mxu0 0.0
  %158 = vmatpush1.msra.mxu0 0.0
  %159 = vmatprep.subr.mxu0 0.0
  %160 = vmatpush1.msra.mxu0 0.0
  %161 = vmatprep.subr.mxu0 0.0
  %162 = vmatpush1.msra.mxu0 0.0
  %163 = vmatprep.subr.mxu0 0.0
  %164 = vmatpush1.msra.mxu0 0.0
  %165 = vmatprep.subr.mxu0 0.0
  %166 = vmatpush1.msra.mxu0 0.0
  %167 = vmatprep.subr.mxu0 0.0
  %168 = vmatpush1.msra.mxu0 0.0
  %169 = vmatprep.subr.mxu0 0.0
  %170 = vmatpush1.msra.mxu0 0.0
  %171 = vmatprep.subr.mxu0 0.0
  %172 = vmatpush1.msra.mxu0 0.0
  %173 = vmatprep.subr.mxu0 0.0
  %174 = vmatpush1.msra.mxu0 0.0
  %175 = vmatprep.subr.mxu0 0.0
  %176 = vmatpush1.msra.mxu0 0.0
  %177 = vmatprep.subr.mxu0 0.0
  %178 = vmatpush1.msra.mxu0 0.0
  %179 = vmatprep.subr.mxu0 0.0
  %180 = vmatpush1.msra.mxu0 0.0
  %181 = vmatprep.subr.mxu0 0.0
  %182 = vmatpush1.msra.mxu0 0.0
  %183 = vmatprep.subr.mxu0 0.0
  %184 = vmatpush1.msra.mxu0 0.0
  %185 = vmatprep.mubr.f32.mxu0 0.0
  %186 = vmatmul.mubr.f32.gmra.mrb[0].mxu0 %v27
  %v187 = vpop.f32.mrb[0].mxu0
  %v188 = vadd.f32 %v23, %v187
  %v189 = vpop.f32.mrb[0].mxu0
  %v190 = vadd.f32 %v23, %v189
  %191 = vdwg.mxu0
  %s192 = scalar_lea.vmem %s3, 16
  %193 = vst [vmem:[%s192] sm:$0x3f] %v188
  %194 = vst.msk [vmem:[%s192 + $0x8] sm:$0x3f] %vm108, %v190
  // Predicated region
  $region14: #{apc_forward.1} parent=0 // pred_check
    _
  $region15: #{apc_forward.1} parent=0 // pred_check_branch
    %196 = sbr.rel (0) target = $region17
  $region16: #{apc_forward.1} parent=0 // pred_region
    _
  $region17: #{apc_forward.1} parent=0 // pred_fallthru
    _
  // Predicated region
  $region18: #{apc_forward.1} parent=0 // pred_check
    _
  $region19: #{apc_forward.1} parent=0 // pred_check_branch
    %198 = sbr.rel (0) target = $region21
  $region20: #{apc_forward.1} parent=0 // pred_region
    _
  $region21: #{apc_forward.1} parent=0 // pred_fallthru
    _

</llo_original>
